<compile_context>
chip_gen: v5e
topology: v5e:2x2
jax: 0.10.0
libtpu: 0.0.40
codegen_flags: <defaults>
</compile_context>

<pallas_src>
import functools

import jax
import jax.numpy as jnp
from jax.experimental import pallas as pl
from jax.experimental.pallas import tpu as pltpu


LANE = 128
SUBLANE = 8


def _round_up(n, m):
    return ((n + m - 1) // m) * m


def _softplus(x):
    # numerically-stable softplus: log(1 + exp(x))
    return jnp.maximum(x, 0.0) + jnp.log1p(jnp.exp(-jnp.abs(x)))


def deep_srgm_kernel(x_ref,           # VMEM (TM, In)   bf16
                     w1_ref, b1_ref,  # VMEM (In, H) bf16, (1, H) f32
                     w2_ref, b2_ref,  # VMEM (H, H)  bf16, (1, H) f32
                     w3_ref, b3_ref,  # VMEM (H, H)  bf16, (1, H) f32
                     w4_ref, b4_ref,  # VMEM (H, Out) bf16 (scalar-folded), (1, Out) f32
                     o_ref):          # VMEM (TM, Out) f32
    cdt = w1_ref.dtype  # MXU-native compute dtype (bf16)

    h = jnp.dot(x_ref[...], w1_ref[...],
                preferred_element_type=jnp.float32) + b1_ref[...]
    h = jnp.maximum(h, 0.0).astype(cdt)

    h = jnp.dot(h, w2_ref[...],
                preferred_element_type=jnp.float32) + b2_ref[...]
    h = jnp.maximum(h, 0.0).astype(cdt)

    h = jnp.dot(h, w3_ref[...],
                preferred_element_type=jnp.float32) + b3_ref[...]
    h = jnp.maximum(h, 0.0).astype(cdt)

    # Layer 4 already has the a/b softplus post-transform folded into w4/b4
    # by the wrapper, so the epilogue is a bare exp.
    y = jnp.dot(h, w4_ref[...],
                preferred_element_type=jnp.float32) + b4_ref[...]
    o_ref[...] = jnp.exp(y)


@functools.partial(jax.jit, static_argnames=("tile_m",))
def deep_srgm_forward(x, params, *, tile_m=4096):
    """x: [B, input_size] f32. params: dict of (pre-transposed) weights."""
    B, in_size = x.shape
    H = params["w1"].shape[1]
    out_size = params["w4"].shape[1]

    # --- fold the scalar softplus post-transform into layer 4.
    a_sp = _softplus(params["a"].astype(jnp.float32))
    b_sp = _softplus(params["b"].astype(jnp.float32))
    w4 = (-b_sp) * params["w4"]
    b4 = jnp.log(a_sp * b_sp) - b_sp * params["b4"]

    # --- bf16 feed for x and the weights (f32 accumulation in the kernel).
    cdt = jnp.bfloat16
    xq = x.astype(cdt)
    w1 = params["w1"].astype(cdt)
    w2 = params["w2"].astype(cdt)
    w3 = params["w3"].astype(cdt)
    w4 = w4.astype(cdt)
    b1 = params["b1"].astype(jnp.float32)
    b2 = params["b2"].astype(jnp.float32)
    b3 = params["b3"].astype(jnp.float32)
    b4 = b4.astype(jnp.float32)

    # --- batch tiling: no wrapper-side jnp.pad; Pallas masks the ragged tail.
    MIN_STEPS = 8  # keep >= 8 pipeline steps when the batch is big enough
    if B <= tile_m:
        tm = B  # single block equal to the full batch dim (always legal)
    else:
        tm = min(tile_m, _round_up(pl.cdiv(B, MIN_STEPS), SUBLANE))
        tm = max(_round_up(tm, SUBLANE), SUBLANE)
    grid = (pl.cdiv(B, tm),)

    # --- VMEM budget: resident weights (double-buffered by default),
    # double-buffered x/out tiles, plus compiler-managed intermediates.
    def _tile_bytes(rows, cols, itemsize):
        return _round_up(max(rows, 1), 16) * _round_up(cols, LANE) * itemsize

    weight_bytes = (_tile_bytes(in_size, H, 2) + 2 * _tile_bytes(H, H, 2)
                    + _tile_bytes(H, out_size, 2)
                    + 3 * _tile_bytes(1, H, 4) + _tile_bytes(1, out_size, 4))
    x_tiles = 2 * _tile_bytes(tm, in_size, 2)        # double-buffered input
    o_tiles = 2 * _tile_bytes(tm, out_size, 4)       # double-buffered output
    interm = 4 * _tile_bytes(tm, H, 4) + 3 * _tile_bytes(tm, H, 2)  # h1..h3, y
    vmem_budget = 2 * weight_bytes + x_tiles + o_tiles + interm + (4 << 20)
    # 56 MiB ceiling: headroom under v7x's 64 MiB per-TC VMEM.
    vmem_limit = int(min(max(vmem_budget, 8 << 20), 56 << 20))

    const_map = lambda i: (0, 0)   # weights/biases stay VMEM-resident
    row_map = lambda i: (i, 0)     # batch-tiled x / out blocks

    grid_spec = pltpu.PrefetchScalarGridSpec(
        num_scalar_prefetch=0,
        grid=grid,
        in_specs=[
            pl.BlockSpec((tm, in_size), row_map),      # x
            pl.BlockSpec((in_size, H), const_map),     # w1
            pl.BlockSpec((1, H), const_map),           # b1
            pl.BlockSpec((H, H), const_map),           # w2
            pl.BlockSpec((1, H), const_map),           # b2
            pl.BlockSpec((H, H), const_map),           # w3
            pl.BlockSpec((1, H), const_map),           # b3
            pl.BlockSpec((H, out_size), const_map),    # w4 (scalar-folded)
            pl.BlockSpec((1, out_size), const_map),    # b4 (scalar-folded)
        ],
        out_specs=pl.BlockSpec((tm, out_size), row_map),  # unpadded (tm, Out)
    )

    out = pl.pallas_call(
        deep_srgm_kernel,
        out_shape=jax.ShapeDtypeStruct((B, out_size), jnp.float32),
        grid_spec=grid_spec,
        compiler_params=pltpu.CompilerParams(
            dimension_semantics=("parallel",),   # batch tiles split across TCs
            vmem_limit_bytes=vmem_limit,
        ),
    )(xq, w1, b1, w2, b2, w3, b3, w4, b4)

    return out


def init_params(key, input_size, hidden, output_size):
    """Deterministic synthetic parameters (mimics nn.Linear init/shapes)."""
    ks = jax.random.split(key, 8)

    def linear(kw, kb, fan_in, fan_out):
        bound = 1.0 / jnp.sqrt(fan_in)
        # PyTorch stores W as [out, in]; we keep the transposed [in, out].
        w = jax.random.uniform(kw, (fan_in, fan_out), jnp.float32, -bound, bound)
        b = jax.random.uniform(kb, (1, fan_out), jnp.float32, -bound, bound)
        return w, b

    w1, b1 = linear(ks[0], ks[1], input_size, hidden)
    w2, b2 = linear(ks[2], ks[3], hidden, hidden)
    w3, b3 = linear(ks[4], ks[5], hidden, hidden)
    w4, b4 = linear(ks[6], ks[7], hidden, output_size)

    return {
        "w1": w1, "b1": b1,
        "w2": w2, "b2": b2,
        "w3": w3, "b3": b3,
        "w4": w4, "b4": b4,
        "a": jnp.float32(1.0),
        "b": jnp.float32(1.0),
    }


def reference_forward(x, p):
    h = jnp.maximum(x @ p["w1"] + p["b1"], 0.0)
    h = jnp.maximum(h @ p["w2"] + p["b2"], 0.0)
    h = jnp.maximum(h @ p["w3"] + p["b3"], 0.0)
    y = h @ p["w4"] + p["b4"]
    a = _softplus(p["a"])
    b = _softplus(p["b"])
    return a * b * jnp.exp(-b * y)


if __name__ == "__main__":
    INPUT_SIZE = 16
    HIDDEN = 32
    OUTPUT_SIZE = 8
    BATCH = 8

    key = jax.random.PRNGKey(0)
    kx, kx2, kp = jax.random.split(key, 3)

    x = jax.random.normal(kx, (BATCH, INPUT_SIZE), jnp.float32)
    params = init_params(kp, INPUT_SIZE, HIDDEN, OUTPUT_SIZE)

    # Primary small-shape check (single grid step).
    out = deep_srgm_forward(x, params)
    out = jax.block_until_ready(out)
    ref = reference_forward(x, params)
    assert out.shape == (BATCH, OUTPUT_SIZE)
    # bf16 feed with f32 accumulation -> loosened tolerance vs f32 reference.
    assert jnp.allclose(out, ref, rtol=5e-2, atol=5e-2), "mismatch vs reference"

    # Secondary check: multi-step grid with a ragged last block (no padding).
    x2 = jax.random.normal(kx2, (200, INPUT_SIZE), jnp.float32)
    out2 = jax.block_until_ready(deep_srgm_forward(x2, params, tile_m=64))
    ref2 = reference_forward(x2, params)
    assert out2.shape == (200, OUTPUT_SIZE)
    assert jnp.allclose(out2, ref2, rtol=5e-2, atol=5e-2), "mismatch (tiled/ragged)"

    print("KERNEL_OK")
</pallas_src>

<mosaic_0001>
module attributes {stable_mosaic.version = 11 : i64} {
  func.func @deep_srgm_kernel(%arg0: i32, %arg1: memref<8x16xbf16, #tpu.memory_space<vmem>>, %arg2: memref<16x32xbf16, #tpu.memory_space<vmem>>, %arg3: memref<1x32xf32, #tpu.memory_space<vmem>>, %arg4: memref<32x32xbf16, #tpu.memory_space<vmem>>, %arg5: memref<1x32xf32, #tpu.memory_space<vmem>>, %arg6: memref<32x32xbf16, #tpu.memory_space<vmem>>, %arg7: memref<1x32xf32, #tpu.memory_space<vmem>>, %arg8: memref<32x8xbf16, #tpu.memory_space<vmem>>, %arg9: memref<1x8xf32, #tpu.memory_space<vmem>>, %arg10: memref<8x8xf32, #tpu.memory_space<vmem>>) attributes {dimension_semantics = [#tpu.dimension_semantics<parallel>], iteration_bounds = array<i64: 1>, scalar_prefetch = 0 : i64, scratch_operands = 0 : i64, tpu.core_type = #tpu.core_type<tc>, window_params = [{transform_indices = @transform_0, window_bounds = array<i64: 8, 16>}, {pipeline_mode = #tpu.pipeline_mode<synchronous>, transform_indices = @transform_1, window_bounds = array<i64: 16, 32>}, {pipeline_mode = #tpu.pipeline_mode<synchronous>, transform_indices = @transform_2, window_bounds = array<i64: 1, 32>}, {pipeline_mode = #tpu.pipeline_mode<synchronous>, transform_indices = @transform_3, window_bounds = array<i64: 32, 32>}, {pipeline_mode = #tpu.pipeline_mode<synchronous>, transform_indices = @transform_4, window_bounds = array<i64: 1, 32>}, {pipeline_mode = #tpu.pipeline_mode<synchronous>, transform_indices = @transform_5, window_bounds = array<i64: 32, 32>}, {pipeline_mode = #tpu.pipeline_mode<synchronous>, transform_indices = @transform_6, window_bounds = array<i64: 1, 32>}, {pipeline_mode = #tpu.pipeline_mode<synchronous>, transform_indices = @transform_7, window_bounds = array<i64: 32, 8>}, {pipeline_mode = #tpu.pipeline_mode<synchronous>, transform_indices = @transform_8, window_bounds = array<i64: 1, 8>}, {transform_indices = @transform_9, window_bounds = array<i64: 8, 8>}]} {
    %c0 = arith.constant 0 : index
    %c0_0 = arith.constant 0 : index
    %0 = vector.load %arg1[%c0, %c0_0] : memref<8x16xbf16, #tpu.memory_space<vmem>>, vector<8x16xbf16>
    %c0_1 = arith.constant 0 : index
    %c0_2 = arith.constant 0 : index
    %1 = vector.load %arg2[%c0_1, %c0_2] : memref<16x32xbf16, #tpu.memory_space<vmem>>, vector<16x32xbf16>
    %cst = arith.constant dense<0.000000e+00> : vector<8x32xf32>
    %2 = tpu.matmul %0, %1, %cst {dimension_numbers = #tpu.dot_dimension_numbers<[1], [0], [0], [1], [0, 0, 1, 1], [], []>} : vector<8x16xbf16>, vector<16x32xbf16>, vector<8x32xf32> -> vector<8x32xf32>
    %c0_3 = arith.constant 0 : index
    %c0_4 = arith.constant 0 : index
    %3 = vector.load %arg3[%c0_3, %c0_4] : memref<1x32xf32, #tpu.memory_space<vmem>>, vector<1x32xf32>
    %4 = vector.broadcast %3 : vector<1x32xf32> to vector<8x32xf32>
    %5 = arith.addf %2, %4 : vector<8x32xf32>
    %cst_5 = arith.constant 0.000000e+00 : f32
    %6 = vector.broadcast %cst_5 : f32 to vector<8x32xf32>
    %7 = arith.maximumf %5, %6 : vector<8x32xf32>
    %8 = arith.truncf %7 : vector<8x32xf32> to vector<8x32xbf16>
    %c0_6 = arith.constant 0 : index
    %c0_7 = arith.constant 0 : index
    %9 = vector.load %arg4[%c0_6, %c0_7] : memref<32x32xbf16, #tpu.memory_space<vmem>>, vector<32x32xbf16>
    %cst_8 = arith.constant dense<0.000000e+00> : vector<8x32xf32>
    %10 = tpu.matmul %8, %9, %cst_8 {dimension_numbers = #tpu.dot_dimension_numbers<[1], [0], [0], [1], [0, 0, 1, 1], [], []>} : vector<8x32xbf16>, vector<32x32xbf16>, vector<8x32xf32> -> vector<8x32xf32>
    %c0_9 = arith.constant 0 : index
    %c0_10 = arith.constant 0 : index
    %11 = vector.load %arg5[%c0_9, %c0_10] : memref<1x32xf32, #tpu.memory_space<vmem>>, vector<1x32xf32>
    %12 = vector.broadcast %11 : vector<1x32xf32> to vector<8x32xf32>
    %13 = arith.addf %10, %12 : vector<8x32xf32>
    %cst_11 = arith.constant 0.000000e+00 : f32
    %14 = vector.broadcast %cst_11 : f32 to vector<8x32xf32>
    %15 = arith.maximumf %13, %14 : vector<8x32xf32>
    %16 = arith.truncf %15 : vector<8x32xf32> to vector<8x32xbf16>
    %c0_12 = arith.constant 0 : index
    %c0_13 = arith.constant 0 : index
    %17 = vector.load %arg6[%c0_12, %c0_13] : memref<32x32xbf16, #tpu.memory_space<vmem>>, vector<32x32xbf16>
    %cst_14 = arith.constant dense<0.000000e+00> : vector<8x32xf32>
    %18 = tpu.matmul %16, %17, %cst_14 {dimension_numbers = #tpu.dot_dimension_numbers<[1], [0], [0], [1], [0, 0, 1, 1], [], []>} : vector<8x32xbf16>, vector<32x32xbf16>, vector<8x32xf32> -> vector<8x32xf32>
    %c0_15 = arith.constant 0 : index
    %c0_16 = arith.constant 0 : index
    %19 = vector.load %arg7[%c0_15, %c0_16] : memref<1x32xf32, #tpu.memory_space<vmem>>, vector<1x32xf32>
    %20 = vector.broadcast %19 : vector<1x32xf32> to vector<8x32xf32>
    %21 = arith.addf %18, %20 : vector<8x32xf32>
    %cst_17 = arith.constant 0.000000e+00 : f32
    %22 = vector.broadcast %cst_17 : f32 to vector<8x32xf32>
    %23 = arith.maximumf %21, %22 : vector<8x32xf32>
    %24 = arith.truncf %23 : vector<8x32xf32> to vector<8x32xbf16>
    %c0_18 = arith.constant 0 : index
    %c0_19 = arith.constant 0 : index
    %25 = vector.load %arg8[%c0_18, %c0_19] : memref<32x8xbf16, #tpu.memory_space<vmem>>, vector<32x8xbf16>
    %cst_20 = arith.constant dense<0.000000e+00> : vector<8x8xf32>
    %26 = tpu.matmul %24, %25, %cst_20 {dimension_numbers = #tpu.dot_dimension_numbers<[1], [0], [0], [1], [0, 0, 1, 1], [], []>} : vector<8x32xbf16>, vector<32x8xbf16>, vector<8x8xf32> -> vector<8x8xf32>
    %c0_21 = arith.constant 0 : index
    %c0_22 = arith.constant 0 : index
    %27 = vector.load %arg9[%c0_21, %c0_22] : memref<1x8xf32, #tpu.memory_space<vmem>>, vector<1x8xf32>
    %28 = vector.broadcast %27 : vector<1x8xf32> to vector<8x8xf32>
    %29 = arith.addf %26, %28 : vector<8x8xf32>
    %30 = math.exp %29 : vector<8x8xf32>
    %c0_23 = arith.constant 0 : index
    %c0_24 = arith.constant 0 : index
    %31 = vector.load %arg10[%c0_23, %c0_24] : memref<8x8xf32, #tpu.memory_space<vmem>>, vector<8x8xf32>
    tpu.vector_store %arg10[%c0_23, %c0_24], %30 {strides = array<i32>} : memref<8x8xf32, #tpu.memory_space<vmem>>, vector<8x8xf32>,
    return
  }
  func.func @transform_0(%arg0: i32) -> (i32, i32) {
    %c0_i32 = arith.constant 0 : i32
    %c0_i32_0 = arith.constant 0 : i32
    return %arg0, %c0_i32 : i32, i32
  }
  func.func @transform_1(%arg0: i32) -> (i32, i32) {
    %c0_i32 = arith.constant 0 : i32
    %c0_i32_0 = arith.constant 0 : i32
    %c0_i32_1 = arith.constant 0 : i32
    return %c0_i32, %c0_i32_0 : i32, i32
  }
  func.func @transform_2(%arg0: i32) -> (i32, i32) {
    %c0_i32 = arith.constant 0 : i32
    %c0_i32_0 = arith.constant 0 : i32
    %c0_i32_1 = arith.constant 0 : i32
    return %c0_i32, %c0_i32_0 : i32, i32
  }
  func.func @transform_3(%arg0: i32) -> (i32, i32) {
    %c0_i32 = arith.constant 0 : i32
    %c0_i32_0 = arith.constant 0 : i32
    %c0_i32_1 = arith.constant 0 : i32
    return %c0_i32, %c0_i32_0 : i32, i32
  }
  func.func @transform_4(%arg0: i32) -> (i32, i32) {
    %c0_i32 = arith.constant 0 : i32
    %c0_i32_0 = arith.constant 0 : i32
    %c0_i32_1 = arith.constant 0 : i32
    return %c0_i32, %c0_i32_0 : i32, i32
  }
  func.func @transform_5(%arg0: i32) -> (i32, i32) {
    %c0_i32 = arith.constant 0 : i32
    %c0_i32_0 = arith.constant 0 : i32
    %c0_i32_1 = arith.constant 0 : i32
    return %c0_i32, %c0_i32_0 : i32, i32
  }
  func.func @transform_6(%arg0: i32) -> (i32, i32) {
    %c0_i32 = arith.constant 0 : i32
    %c0_i32_0 = arith.constant 0 : i32
    %c0_i32_1 = arith.constant 0 : i32
    return %c0_i32, %c0_i32_0 : i32, i32
  }
  func.func @transform_7(%arg0: i32) -> (i32, i32) {
    %c0_i32 = arith.constant 0 : i32
    %c0_i32_0 = arith.constant 0 : i32
    %c0_i32_1 = arith.constant 0 : i32
    return %c0_i32, %c0_i32_0 : i32, i32
  }
  func.func @transform_8(%arg0: i32) -> (i32, i32) {
    %c0_i32 = arith.constant 0 : i32
    %c0_i32_0 = arith.constant 0 : i32
    %c0_i32_1 = arith.constant 0 : i32
    return %c0_i32, %c0_i32_0 : i32, i32
  }
  func.func @transform_9(%arg0: i32) -> (i32, i32) {
    %c0_i32 = arith.constant 0 : i32
    %c0_i32_0 = arith.constant 0 : i32
    return %arg0, %c0_i32 : i32, i32
  }
}

</mosaic_0001>

<llo_original>
// kernel: deep_srgm_forward.1
$region0: #{deep_srgm_forward.1}
  #allocation0 [shape = 'u32[]', space=smem, size = 0x4, offset = 0x4, fixed_abs, tag = 'smem constant byte address 0x4 - core index']
  #allocation1 [shape = 'u32[72,128]{1,0:T(1,128)}', space=vmem, size = 0x9000, scoped, tag = 'internal scratch']
  %s0 = inlined_call_operand.vmem [shape: bf16[8,16], index: 0, kind: input, shape index: {}]
  %s1 = inlined_call_operand.vmem [shape: bf16[16,32], index: 1, kind: input, shape index: {}]
  %s2 = inlined_call_operand.vmem [shape: f32[1,32], index: 2, kind: input, shape index: {}]
  %s3 = inlined_call_operand.vmem [shape: bf16[32,32], index: 3, kind: input, shape index: {}]
  %s4 = inlined_call_operand.vmem [shape: f32[1,32], index: 4, kind: input, shape index: {}]
  %s5 = inlined_call_operand.vmem [shape: bf16[32,32], index: 5, kind: input, shape index: {}]
  %s6 = inlined_call_operand.vmem [shape: f32[1,32], index: 6, kind: input, shape index: {}]
  %s7 = inlined_call_operand.vmem [shape: bf16[32,8], index: 7, kind: input, shape index: {}]
  %s8 = inlined_call_operand.vmem [shape: f32[1,8], index: 8, kind: input, shape index: {}]
  %s9 = inlined_call_operand.hbm [shape: f32[8,8], index: 9, kind: output, shape index: {}]
  %s10 = sld [smem:[#allocation0]]
  $region46: #{deep_srgm_forward.1} parent=0
    _
  %s12 = ssub.s32 1, %s10
  %s13 = scalar_select 0, %s12, %s10
  $region1: #{deep_srgm_forward.1} parent=0
    #allocation2 [shape = 'u8[4096]{0}', space=vmem, size = 0x1000, scoped, tag = 'output window, operand 0, single buffered']
    #allocation3 [shape = 's32[1]{0}', space=sflag, size = 0x4, scoped, tag = 'scoped memory for deep_srgm_forward.1']
    %14 = vsyncpa [#allocation3], 0
    // Predicated region
    $region2: #{deep_srgm_forward.1} parent=1 // pred_check
      _
    $region3: #{deep_srgm_forward.1} parent=1 // pred_check_branch
      %16 = sbr.rel (0) target = $region5
    $region4: #{deep_srgm_forward.1} parent=1 // pred_region
      _
    $region5: #{deep_srgm_forward.1} parent=1 // pred_fallthru
      _
    // Predicated region
    $region6: #{deep_srgm_forward.1} parent=1 // pred_check
      _
    $region7: #{deep_srgm_forward.1} parent=1 // pred_check_branch
      %18 = sbr.rel (0) target = $region9
    $region8: #{deep_srgm_forward.1} parent=1 // pred_region
      _
    $region9: #{deep_srgm_forward.1} parent=1 // pred_fallthru
      _
    // Predicated region
    $region10: #{deep_srgm_forward.1} parent=1 // pred_check
      _
    $region11: #{deep_srgm_forward.1} parent=1 // pred_check_branch
      %20 = sbr.rel (0) target = $region13
    $region12: #{deep_srgm_forward.1} parent=1 // pred_region
      _
    $region13: #{deep_srgm_forward.1} parent=1 // pred_fallthru
      _
    // Predicated region
    $region14: #{deep_srgm_forward.1} parent=1 // pred_check
      _
    $region15: #{deep_srgm_forward.1} parent=1 // pred_check_branch
      %22 = sbr.rel (0) target = $region17
    $region16: #{deep_srgm_forward.1} parent=1 // pred_region
      _
    $region17: #{deep_srgm_forward.1} parent=1 // pred_fallthru
      _
    // Predicated region
    $region18: #{deep_srgm_forward.1} parent=1 // pred_check
      _
    $region19: #{deep_srgm_forward.1} parent=1 // pred_check_branch
      %24 = sbr.rel (0) target = $region21
    $region20: #{deep_srgm_forward.1} parent=1 // pred_region
      _
    $region21: #{deep_srgm_forward.1} parent=1 // pred_fallthru
      _
    // Predicated region
    $region22: #{deep_srgm_forward.1} parent=1 // pred_check
      _
    $region23: #{deep_srgm_forward.1} parent=1 // pred_check_branch
      %26 = sbr.rel (0) target = $region25
    $region24: #{deep_srgm_forward.1} parent=1 // pred_region
      _
    $region25: #{deep_srgm_forward.1} parent=1 // pred_fallthru
      _
    // Predicated region
    $region26: #{deep_srgm_forward.1} parent=1 // pred_check
      _
    $region27: #{deep_srgm_forward.1} parent=1 // pred_check_branch
      %28 = sbr.rel (0) target = $region29
    $region28: #{deep_srgm_forward.1} parent=1 // pred_region
      _
    $region29: #{deep_srgm_forward.1} parent=1 // pred_fallthru
      _
    // Predicated region
    $region30: #{deep_srgm_forward.1} parent=1 // pred_check
      _
    $region31: #{deep_srgm_forward.1} parent=1 // pred_check_branch
      %30 = sbr.rel (0) target = $region33
    $region32: #{deep_srgm_forward.1} parent=1 // pred_region
      _
    $region33: #{deep_srgm_forward.1} parent=1 // pred_fallthru
      _
    // Predicated region
    $region34: #{deep_srgm_forward.1} parent=1 // pred_check
      _
    $region35: #{deep_srgm_forward.1} parent=1 // pred_check_branch
      %32 = sbr.rel (0) target = $region37
    $region36: #{deep_srgm_forward.1} parent=1 // pred_region
      _
    $region37: #{deep_srgm_forward.1} parent=1 // pred_fallthru
      _
    %v34 = vld [vmem:[%s0] sm:$0xf]
    %v35 = vld [vmem:[%s1] sm:$0xf]
    %v36 = vld [vmem:[%s1 + $0x4] sm:$0xf]
    %v37 = vld [vmem:[%s2] sm:$0x1]
    %v39 = vperm.slane %v37, 0
    %v43 = vunpack.c.l.b16 %v35
    %v44 = vunpack.c.l.b16 %v36
    %v45 = vpack.c.b16 %v44, %v43
    %vm47 = vcmask 130048
    %v49 = vsel %vm47, %v34, 0
    %51 = vmatpush.bf16.msra.mxu0 0
    %52 = vmatpush.bf16.msra.mxu0 0
    %53 = vmatpush.bf16.msra.mxu0 0
    %54 = vmatpush.bf16.msra.mxu0 0
    %55 = vmatpush.bf16.msra.mxu0 0
    %56 = vmatpush.bf16.msra.mxu0 0
    %57 = vmatpush.bf16.msra.mxu0 0
    %58 = vmatpush.bf16.msra.mxu0 %v45
    %59 = vmatmul.bf16.gmra.mxu0 %v49
    %v60 = vpop.f32.mrf.mxu0
    %v61 = vadd.f32 %v39, %v60
    %v62 = vpop.f32.mrf.mxu0
    %63 = vdwg.mxu0
    %v64 = vmax.f32 %v61, 0.0
    %v65 = vpack.c.bf16 %v64, %v64
    %v66 = vld [vmem:[%s3] sm:$0xf]
    %v67 = vld [vmem:[%s3 + $0x4] sm:$0xf]
    %v68 = vld [vmem:[%s3 + $0x8] sm:$0xf]
    %v69 = vld [vmem:[%s3 + $0xc] sm:$0xf]
    %v70 = vld [vmem:[%s4] sm:$0x1]
    %v72 = vperm.slane %v70, 0
    %v78 = vunpack.c.l.b16 %v66
    %v79 = vunpack.c.l.b16 %v67
    %v80 = vunpack.c.l.b16 %v68
    %v81 = vunpack.c.l.b16 %v69
    %v82 = vpack.c.b16 %v79, %v78
    %v83 = vpack.c.b16 %v81, %v80
    %vm86 = vcmask 261120
    %v88 = vsel %vm86, %v65, 0
    %90 = vmatpush.bf16.msra.mxu0 0
    %91 = vmatpush.bf16.msra.mxu0 0
    %92 = vmatpush.bf16.msra.mxu0 0
    %93 = vmatpush.bf16.msra.mxu0 0
    %94 = vmatpush.bf16.msra.mxu0 0
    %95 = vmatpush.bf16.msra.mxu0 0
    %96 = vmatpush.bf16.msra.mxu0 %v83
    %97 = vmatpush.bf16.msra.mxu0 %v82
    %98 = vmatmul.bf16.gmra.mxu0 %v88
    %v99 = vpop.f32.mrf.mxu0
    %v100 = vadd.f32 %v72, %v99
    %v101 = vpop.f32.mrf.mxu0
    %102 = vdwg.mxu0
    %v103 = vmax.f32 %v100, 0.0
    %v104 = vpack.c.bf16 %v103, %v103
    %v105 = vld [vmem:[%s5] sm:$0xf]
    %v106 = vld [vmem:[%s5 + $0x4] sm:$0xf]
    %v107 = vld [vmem:[%s5 + $0x8] sm:$0xf]
    %v108 = vld [vmem:[%s5 + $0xc] sm:$0xf]
    %v109 = vld [vmem:[%s6] sm:$0x1]
    %v111 = vperm.slane %v109, 0
    %v117 = vunpack.c.l.b16 %v105
    %v118 = vunpack.c.l.b16 %v106
    %v119 = vunpack.c.l.b16 %v107
    %v120 = vunpack.c.l.b16 %v108
    %v121 = vpack.c.b16 %v118, %v117
    %v122 = vpack.c.b16 %v120, %v119
    %v126 = vsel %vm86, %v104, 0
    %128 = vmatpush.bf16.msra.mxu0 0
    %129 = vmatpush.bf16.msra.mxu0 0
    %130 = vmatpush.bf16.msra.mxu0 0
    %131 = vmatpush.bf16.msra.mxu0 0
    %132 = vmatpush.bf16.msra.mxu0 0
    %133 = vmatpush.bf16.msra.mxu0 0
    %134 = vmatpush.bf16.msra.mxu0 %v122
    %135 = vmatpush.bf16.msra.mxu0 %v121
    %136 = vmatmul.bf16.gmra.mxu0 %v126
    %v137 = vpop.f32.mrf.mxu0
    %v138 = vadd.f32 %v111, %v137
    %v139 = vpop.f32.mrf.mxu0
    %140 = vdwg.mxu0
    %v141 = vmax.f32 %v138, 0.0
    %v142 = vpack.c.bf16 %v141, %v141
    %v143 = vld [vmem:[%s7] sm:$0xf]
    %v144 = vld [vmem:[%s7 + $0x4] sm:$0xf]
    %v145 = vld [vmem:[%s7 + $0x8] sm:$0xf]
    %v146 = vld [vmem:[%s7 + $0xc] sm:$0xf]
    %v147 = vld [vmem:[%s8] sm:$0x1]
    %v149 = vperm.slane %v147, 0
    %v155 = vunpack.c.l.b16 %v143
    %v156 = vunpack.c.l.b16 %v144
    %v157 = vunpack.c.l.b16 %v145
    %v158 = vunpack.c.l.b16 %v146
    %v159 = vpack.c.b16 %v156, %v155
    %v160 = vpack.c.b16 %v158, %v157
    %v164 = vsel %vm86, %v142, 0
    %166 = vmatpush.bf16.msra.mxu0 0
    %167 = vmatpush.bf16.msra.mxu0 0
    %168 = vmatpush.bf16.msra.mxu0 0
    %169 = vmatpush.bf16.msra.mxu0 0
    %170 = vmatpush.bf16.msra.mxu0 0
    %171 = vmatpush.bf16.msra.mxu0 0
    %172 = vmatpush.bf16.msra.mxu0 %v160
    %173 = vmatpush.bf16.msra.mxu0 %v159
    %174 = vmatmul.bf16.gmra.mxu0 %v164
    %v175 = vpop.f32.mrf.mxu0
    %v176 = vadd.f32 %v149, %v175
    %v177 = vpop.f32.mrf.mxu0
    %178 = vdwg.mxu0
    %v179 = vmul.f32 %v176, 1.442695
    %v180 = vpow.pop %v179
    %vm181 = vcmask 64512
    %182 = vst.msk [vmem:[#allocation2] sm:$0xff] %vm181, %v180
    // Predicated region
    $region38: #{deep_srgm_forward.1} parent=1 // pred_check
      _
    $region39: #{deep_srgm_forward.1} parent=1 // pred_check_branch
      %184 = sbr.rel (0) target = $region41
    $region40: #{deep_srgm_forward.1} parent=1 // pred_region
      %186 = vsyncadd [#allocation3], 0
      %s188 = sshll.u32 [#allocation2], 4
      %s189 = int_to_ptr.vmem [resolvable:$true] %s188
      %s190 = sshll.u32 %s9, 4
      %s191 = int_to_ptr.hbm [resolvable:$true] %s190
      %193 = dma.vmem_to_hbm [thread:$0]  %s189, 128, %s191, [#allocation3]
    $region41: #{deep_srgm_forward.1} parent=1 // pred_fallthru
      _
    // Predicated region
    $region42: #{deep_srgm_forward.1} parent=1 // pred_check
      _
    $region43: #{deep_srgm_forward.1} parent=1 // pred_check_branch
      %195 = sbr.rel (0) target = $region45
    $region44: #{deep_srgm_forward.1} parent=1 // pred_region
      %197 = dma.done [#allocation3], 128
    $region45: #{deep_srgm_forward.1} parent=1 // pred_fallthru
      _
    %198 = vsyncpa [#allocation3], 1

</llo_original>
